<compile_context>
chip_gen: v5e
topology: v5e:2x2
jax: 0.10.0
libtpu: 0.0.40
codegen_flags: <defaults>
</compile_context>

<pallas_src>
import jax
import jax.numpy as jnp
from jax.experimental import pallas as pl
from jax.experimental.pallas import tpu as pltpu


def encoder_kernel(x_ref, w_ref, b_ref, o_ref):
    """Fused Linear + ReLU: o = relu(x @ w + b). bf16 MXU inputs, f32 epilogue."""
    acc = jnp.dot(x_ref[...], w_ref[...], preferred_element_type=jnp.float32)
    out = acc + b_ref[...]                       # (tm, E) f32 + (1, E) f32 broadcast
    o_ref[...] = jnp.maximum(out, 0.0).astype(o_ref.dtype)


def _scoped_vmem_budget_bytes():
    """Generation-aware conservative scoped-VMEM budget."""
    try:
        info = pltpu.get_tpu_info()
        cap = getattr(info, "vmem_capacity_bytes", None)
        if cap:
            # Physical VMEM: 128 MiB (v5e/v6e) or 64 MiB (v7x); keep headroom.
            return cap // 2
    except Exception:
        pass
    return 16 * 1024 * 1024  # v5e default scoped-VMEM limit (most conservative)


def _encoder_forward_impl(x_nchw, w, b):
    """x_nchw: (B, C, W, H) float32; w: (D, E) float32; b: (E,) float32 -> (B, E) f32."""
    B = x_nchw.shape[0]
    x = x_nchw.reshape(B, -1)          # same semantics as torch .view(batch, -1) (NCHW)
    D, E = w.shape
    assert x.shape[1] == D, f"flattened dim {x.shape[1]} != weight rows {D}"

    # bf16 inputs to the MXU; bias stays f32 (f32 accumulate + f32 epilogue).
    x_bf = x.astype(jnp.bfloat16)
    w_bf = w.astype(jnp.bfloat16)
    b2 = b.reshape(1, E).astype(jnp.float32)
    out_dtype = x_nchw.dtype

    # Choose grid: single step for small batches; parallel M-tiling for big ones
    # (v7x has 2 TensorCores -> near-free ~2x once the kernel is compute-bound).
    M_TILE = 256
    if B >= 2 * M_TILE and B % M_TILE == 0:
        tm = M_TILE
        grid = (B // tm,)
        in_specs = [
            pl.BlockSpec((tm, D), lambda i: (i, 0)),   # x tile
            pl.BlockSpec((D, E), lambda i: (0, 0)),    # weight, resident
            pl.BlockSpec((1, E), lambda i: (0, 0)),    # bias, resident
        ]
        out_specs = pl.BlockSpec((tm, E), lambda i: (i, 0))
        compiler_params = pltpu.CompilerParams(dimension_semantics=("parallel",))
    else:
        tm = B
        grid = ()
        in_specs = [
            pl.BlockSpec((B, D), lambda: (0, 0)),
            pl.BlockSpec((D, E), lambda: (0, 0)),
            pl.BlockSpec((1, E), lambda: (0, 0)),
        ]
        out_specs = pl.BlockSpec((B, E), lambda: (0, 0))
        compiler_params = None

    # VMEM check: double-buffered bf16 input tiles + resident bf16 weight,
    # f32 bias and double-buffered f32 output tile.
    per_step_bytes = 2 * (tm * D * 2) + 2 * (D * E * 2) + 2 * (E * 4) + 2 * (tm * E * 4)
    assert per_step_bytes <= _scoped_vmem_budget_bytes(), (
        "Encoder working set too large for a single VMEM-resident step; "
        "add K-tiling (see TODO at top of file)."
    )

    cost = pl.CostEstimate(
        flops=2 * B * D * E,
        transcendentals=0,
        bytes_accessed=B * D * 2 + D * E * 2 + E * 4 + B * E * 4,
    )

    kwargs = dict(
        out_shape=jax.ShapeDtypeStruct((B, E), out_dtype),
        grid=grid,
        in_specs=in_specs,
        out_specs=out_specs,
        cost_estimate=cost,
    )
    if compiler_params is not None:
        kwargs["compiler_params"] = compiler_params

    return pl.pallas_call(encoder_kernel, **kwargs)(x_bf, w_bf, b2)


# jit so the flatten / reshape / casts fuse with the custom call (launch-bound regime).
encoder_forward = jax.jit(_encoder_forward_impl)


if __name__ == "__main__":
    # Module config: dims=(channels, width, height), enc_out_dim
    channels, width, height = 4, 16, 16
    enc_out_dim = 32
    input_dim = channels * width * height  # 1024
    batch = 2

    key = jax.random.PRNGKey(0)
    kx, kw, kb = jax.random.split(key, 3)

    # Deterministic init mimicking nn.Linear (uniform in +-1/sqrt(fan_in)).
    bound = 1.0 / (input_dim ** 0.5)
    # w stored as (input_dim, enc_out_dim) = transpose of PyTorch (out, in).
    w = jax.random.uniform(kw, (input_dim, enc_out_dim), jnp.float32, -bound, bound)
    b = jax.random.uniform(kb, (enc_out_dim,), jnp.float32, -bound, bound)

    x = jax.random.normal(kx, (batch, channels, width, height), jnp.float32)

    out = encoder_forward(x, w, b)
    out = jax.block_until_ready(out)

    # Reference check (plain JAX, f32). Tolerance relaxed for bf16 MXU inputs.
    ref = jnp.maximum(x.reshape(batch, -1) @ w + b, 0.0)
    assert out.shape == (batch, enc_out_dim)
    assert out.dtype == jnp.float32
    assert jnp.allclose(out, ref, atol=3e-2, rtol=3e-2), (
        float(jnp.max(jnp.abs(out - ref)))
    )

    print("KERNEL_OK")
</pallas_src>

<mosaic_0001>
module attributes {stable_mosaic.version = 11 : i64} {
  func.func @encoder_kernel(%arg0: memref<2x1024xbf16, #tpu.memory_space<vmem>>, %arg1: memref<1024x32xbf16, #tpu.memory_space<vmem>>, %arg2: memref<1x32xf32, #tpu.memory_space<vmem>>, %arg3: memref<2x32xf32, #tpu.memory_space<vmem>>) attributes {dimension_semantics = [], scalar_prefetch = 0 : i64, scratch_operands = 0 : i64, tpu.core_type = #tpu.core_type<tc>} {
    %c0 = arith.constant 0 : index
    %c0_0 = arith.constant 0 : index
    %0 = vector.load %arg0[%c0, %c0_0] : memref<2x1024xbf16, #tpu.memory_space<vmem>>, vector<2x1024xbf16>
    %c0_1 = arith.constant 0 : index
    %c0_2 = arith.constant 0 : index
    %1 = vector.load %arg1[%c0_1, %c0_2] : memref<1024x32xbf16, #tpu.memory_space<vmem>>, vector<1024x32xbf16>
    %cst = arith.constant dense<0.000000e+00> : vector<2x32xf32>
    %2 = tpu.matmul %0, %1, %cst {dimension_numbers = #tpu.dot_dimension_numbers<[1], [0], [0], [1], [0, 0, 1, 1], [], []>} : vector<2x1024xbf16>, vector<1024x32xbf16>, vector<2x32xf32> -> vector<2x32xf32>
    %c0_3 = arith.constant 0 : index
    %c0_4 = arith.constant 0 : index
    %3 = vector.load %arg2[%c0_3, %c0_4] : memref<1x32xf32, #tpu.memory_space<vmem>>, vector<1x32xf32>
    %4 = vector.broadcast %3 : vector<1x32xf32> to vector<2x32xf32>
    %5 = arith.addf %2, %4 : vector<2x32xf32>
    %cst_5 = arith.constant 0.000000e+00 : f32
    %6 = vector.broadcast %cst_5 : f32 to vector<2x32xf32>
    %7 = arith.maximumf %5, %6 : vector<2x32xf32>
    %c0_6 = arith.constant 0 : index
    %c0_7 = arith.constant 0 : index
    %8 = vector.load %arg3[%c0_6, %c0_7] : memref<2x32xf32, #tpu.memory_space<vmem>>, vector<2x32xf32>
    tpu.vector_store %arg3[%c0_6, %c0_7], %7 {strides = array<i32>} : memref<2x32xf32, #tpu.memory_space<vmem>>, vector<2x32xf32>,
    return
  }
}

</mosaic_0001>

<llo_original>
// kernel: _encoder_forward_impl.1
$region0: #{_encoder_forward_impl.1}
  #allocation0 [shape = 'u32[]', space=smem, size = 0x4, offset = 0x4, fixed_abs, tag = 'smem constant byte address 0x4 - core index']
  #allocation1 [shape = 'u32[72,128]{1,0:T(1,128)}', space=vmem, size = 0x9000, scoped, tag = 'internal scratch']
  %s0 = inlined_call_operand.vmem [shape: bf16[2,1024], index: 0, kind: input, shape index: {}]
  %s1 = inlined_call_operand.vmem [shape: bf16[1024,32], index: 1, kind: input, shape index: {}]
  %s2 = inlined_call_operand.vmem [shape: f32[1,32], index: 2, kind: input, shape index: {}]
  %s3 = inlined_call_operand.hbm [shape: f32[2,32], index: 3, kind: output, shape index: {}]
  %s4 = sld [smem:[#allocation0]]
  $region22: #{_encoder_forward_impl.1} parent=0
    _
  %s6 = ssub.s32 1, %s4
  %s7 = scalar_select 0, %s6, %s4
  $region1: #{_encoder_forward_impl.1} parent=0
    #allocation2 [shape = 'u8[1024]{0}', space=vmem, size = 0x400, scoped, tag = 'output window, operand 0, single buffered']
    #allocation3 [shape = 's32[1]{0}', space=sflag, size = 0x4, scoped, tag = 'scoped memory for _encoder_forward_impl.1']
    %8 = vsyncpa [#allocation3], 0
    // Predicated region
    $region2: #{_encoder_forward_impl.1} parent=1 // pred_check
      _
    $region3: #{_encoder_forward_impl.1} parent=1 // pred_check_branch
      %10 = sbr.rel (0) target = $region5
    $region4: #{_encoder_forward_impl.1} parent=1 // pred_region
      _
    $region5: #{_encoder_forward_impl.1} parent=1 // pred_fallthru
      _
    // Predicated region
    $region6: #{_encoder_forward_impl.1} parent=1 // pred_check
      _
    $region7: #{_encoder_forward_impl.1} parent=1 // pred_check_branch
      %12 = sbr.rel (0) target = $region9
    $region8: #{_encoder_forward_impl.1} parent=1 // pred_region
      _
    $region9: #{_encoder_forward_impl.1} parent=1 // pred_fallthru
      _
    // Predicated region
    $region10: #{_encoder_forward_impl.1} parent=1 // pred_check
      _
    $region11: #{_encoder_forward_impl.1} parent=1 // pred_check_branch
      %14 = sbr.rel (0) target = $region13
    $region12: #{_encoder_forward_impl.1} parent=1 // pred_region
      _
    $region13: #{_encoder_forward_impl.1} parent=1 // pred_fallthru
      _
    %v15 = vld [vmem:[%s0] sm:$0xff]
    %v16 = vld [vmem:[%s1] sm:$0xf]
    %v17 = vld [vmem:[%s1 + $0x4] sm:$0xf]
    %v18 = vld [vmem:[%s1 + $0x8] sm:$0xf]
    %v19 = vld [vmem:[%s1 + $0xc] sm:$0xf]
    %v20 = vld [vmem:[%s1 + $0x10] sm:$0xf]
    %v21 = vld [vmem:[%s1 + $0x14] sm:$0xf]
    %v22 = vld [vmem:[%s1 + $0x18] sm:$0xf]
    %v23 = vld [vmem:[%s1 + $0x1c] sm:$0xf]
    %v24 = vld [vmem:[%s1 + $0x20] sm:$0xf]
    %v25 = vld [vmem:[%s1 + $0x24] sm:$0xf]
    %v26 = vld [vmem:[%s1 + $0x28] sm:$0xf]
    %v27 = vld [vmem:[%s1 + $0x2c] sm:$0xf]
    %v28 = vld [vmem:[%s1 + $0x30] sm:$0xf]
    %v29 = vld [vmem:[%s1 + $0x34] sm:$0xf]
    %v30 = vld [vmem:[%s1 + $0x38] sm:$0xf]
    %v31 = vld [vmem:[%s1 + $0x3c] sm:$0xf]
    %v32 = vld [vmem:[%s1 + $0x40] sm:$0xf]
    %v33 = vld [vmem:[%s1 + $0x44] sm:$0xf]
    %v34 = vld [vmem:[%s1 + $0x48] sm:$0xf]
    %v35 = vld [vmem:[%s1 + $0x4c] sm:$0xf]
    %v36 = vld [vmem:[%s1 + $0x50] sm:$0xf]
    %v37 = vld [vmem:[%s1 + $0x54] sm:$0xf]
    %v38 = vld [vmem:[%s1 + $0x58] sm:$0xf]
    %v39 = vld [vmem:[%s1 + $0x5c] sm:$0xf]
    %v40 = vld [vmem:[%s1 + $0x60] sm:$0xf]
    %v41 = vld [vmem:[%s1 + $0x64] sm:$0xf]
    %v42 = vld [vmem:[%s1 + $0x68] sm:$0xf]
    %v43 = vld [vmem:[%s1 + $0x6c] sm:$0xf]
    %v44 = vld [vmem:[%s1 + $0x70] sm:$0xf]
    %v45 = vld [vmem:[%s1 + $0x74] sm:$0xf]
    %v46 = vld [vmem:[%s1 + $0x78] sm:$0xf]
    %v47 = vld [vmem:[%s1 + $0x7c] sm:$0xf]
    %v48 = vld [vmem:[%s1 + $0x80] sm:$0xf]
    %v49 = vld [vmem:[%s1 + $0x84] sm:$0xf]
    %v50 = vld [vmem:[%s1 + $0x88] sm:$0xf]
    %v51 = vld [vmem:[%s1 + $0x8c] sm:$0xf]
    %v52 = vld [vmem:[%s1 + $0x90] sm:$0xf]
    %v53 = vld [vmem:[%s1 + $0x94] sm:$0xf]
    %v54 = vld [vmem:[%s1 + $0x98] sm:$0xf]
    %v55 = vld [vmem:[%s1 + $0x9c] sm:$0xf]
    %v56 = vld [vmem:[%s1 + $0xa0] sm:$0xf]
    %v57 = vld [vmem:[%s1 + $0xa4] sm:$0xf]
    %v58 = vld [vmem:[%s1 + $0xa8] sm:$0xf]
    %v59 = vld [vmem:[%s1 + $0xac] sm:$0xf]
    %v60 = vld [vmem:[%s1 + $0xb0] sm:$0xf]
    %v61 = vld [vmem:[%s1 + $0xb4] sm:$0xf]
    %v62 = vld [vmem:[%s1 + $0xb8] sm:$0xf]
    %v63 = vld [vmem:[%s1 + $0xbc] sm:$0xf]
    %v64 = vld [vmem:[%s1 + $0xc0] sm:$0xf]
    %v65 = vld [vmem:[%s1 + $0xc4] sm:$0xf]
    %v66 = vld [vmem:[%s1 + $0xc8] sm:$0xf]
    %v67 = vld [vmem:[%s1 + $0xcc] sm:$0xf]
    %v68 = vld [vmem:[%s1 + $0xd0] sm:$0xf]
    %v69 = vld [vmem:[%s1 + $0xd4] sm:$0xf]
    %v70 = vld [vmem:[%s1 + $0xd8] sm:$0xf]
    %v71 = vld [vmem:[%s1 + $0xdc] sm:$0xf]
    %v72 = vld [vmem:[%s1 + $0xe0] sm:$0xf]
    %v73 = vld [vmem:[%s1 + $0xe4] sm:$0xf]
    %v74 = vld [vmem:[%s1 + $0xe8] sm:$0xf]
    %v75 = vld [vmem:[%s1 + $0xec] sm:$0xf]
    %v76 = vld [vmem:[%s1 + $0xf0] sm:$0xf]
    %v77 = vld [vmem:[%s1 + $0xf4] sm:$0xf]
    %v78 = vld [vmem:[%s1 + $0xf8] sm:$0xf]
    %v79 = vld [vmem:[%s1 + $0xfc] sm:$0xf]
    %v80 = vld [vmem:[%s1 + $0x100] sm:$0xf]
    %v81 = vld [vmem:[%s1 + $0x104] sm:$0xf]
    %v82 = vld [vmem:[%s1 + $0x108] sm:$0xf]
    %v83 = vld [vmem:[%s1 + $0x10c] sm:$0xf]
    %v84 = vld [vmem:[%s1 + $0x110] sm:$0xf]
    %v85 = vld [vmem:[%s1 + $0x114] sm:$0xf]
    %v86 = vld [vmem:[%s1 + $0x118] sm:$0xf]
    %v87 = vld [vmem:[%s1 + $0x11c] sm:$0xf]
    %v88 = vld [vmem:[%s1 + $0x120] sm:$0xf]
    %v89 = vld [vmem:[%s1 + $0x124] sm:$0xf]
    %v90 = vld [vmem:[%s1 + $0x128] sm:$0xf]
    %v91 = vld [vmem:[%s1 + $0x12c] sm:$0xf]
    %v92 = vld [vmem:[%s1 + $0x130] sm:$0xf]
    %v93 = vld [vmem:[%s1 + $0x134] sm:$0xf]
    %v94 = vld [vmem:[%s1 + $0x138] sm:$0xf]
    %v95 = vld [vmem:[%s1 + $0x13c] sm:$0xf]
    %v96 = vld [vmem:[%s1 + $0x140] sm:$0xf]
    %v97 = vld [vmem:[%s1 + $0x144] sm:$0xf]
    %v98 = vld [vmem:[%s1 + $0x148] sm:$0xf]
    %v99 = vld [vmem:[%s1 + $0x14c] sm:$0xf]
    %v100 = vld [vmem:[%s1 + $0x150] sm:$0xf]
    %v101 = vld [vmem:[%s1 + $0x154] sm:$0xf]
    %v102 = vld [vmem:[%s1 + $0x158] sm:$0xf]
    %v103 = vld [vmem:[%s1 + $0x15c] sm:$0xf]
    %v104 = vld [vmem:[%s1 + $0x160] sm:$0xf]
    %v105 = vld [vmem:[%s1 + $0x164] sm:$0xf]
    %v106 = vld [vmem:[%s1 + $0x168] sm:$0xf]
    %v107 = vld [vmem:[%s1 + $0x16c] sm:$0xf]
    %v108 = vld [vmem:[%s1 + $0x170] sm:$0xf]
    %v109 = vld [vmem:[%s1 + $0x174] sm:$0xf]
    %v110 = vld [vmem:[%s1 + $0x178] sm:$0xf]
    %v111 = vld [vmem:[%s1 + $0x17c] sm:$0xf]
    %v112 = vld [vmem:[%s1 + $0x180] sm:$0xf]
    %v113 = vld [vmem:[%s1 + $0x184] sm:$0xf]
    %v114 = vld [vmem:[%s1 + $0x188] sm:$0xf]
    %v115 = vld [vmem:[%s1 + $0x18c] sm:$0xf]
    %v116 = vld [vmem:[%s1 + $0x190] sm:$0xf]
    %v117 = vld [vmem:[%s1 + $0x194] sm:$0xf]
    %v118 = vld [vmem:[%s1 + $0x198] sm:$0xf]
    %v119 = vld [vmem:[%s1 + $0x19c] sm:$0xf]
    %v120 = vld [vmem:[%s1 + $0x1a0] sm:$0xf]
    %v121 = vld [vmem:[%s1 + $0x1a4] sm:$0xf]
    %v122 = vld [vmem:[%s1 + $0x1a8] sm:$0xf]
    %v123 = vld [vmem:[%s1 + $0x1ac] sm:$0xf]
    %v124 = vld [vmem:[%s1 + $0x1b0] sm:$0xf]
    %v125 = vld [vmem:[%s1 + $0x1b4] sm:$0xf]
    %v126 = vld [vmem:[%s1 + $0x1b8] sm:$0xf]
    %v127 = vld [vmem:[%s1 + $0x1bc] sm:$0xf]
    %v128 = vld [vmem:[%s1 + $0x1c0] sm:$0xf]
    %v129 = vld [vmem:[%s1 + $0x1c4] sm:$0xf]
    %v130 = vld [vmem:[%s1 + $0x1c8] sm:$0xf]
    %v131 = vld [vmem:[%s1 + $0x1cc] sm:$0xf]
    %v132 = vld [vmem:[%s1 + $0x1d0] sm:$0xf]
    %v133 = vld [vmem:[%s1 + $0x1d4] sm:$0xf]
    %v134 = vld [vmem:[%s1 + $0x1d8] sm:$0xf]
    %v135 = vld [vmem:[%s1 + $0x1dc] sm:$0xf]
    %v136 = vld [vmem:[%s1 + $0x1e0] sm:$0xf]
    %v137 = vld [vmem:[%s1 + $0x1e4] sm:$0xf]
    %v138 = vld [vmem:[%s1 + $0x1e8] sm:$0xf]
    %v139 = vld [vmem:[%s1 + $0x1ec] sm:$0xf]
    %v140 = vld [vmem:[%s1 + $0x1f0] sm:$0xf]
    %v141 = vld [vmem:[%s1 + $0x1f4] sm:$0xf]
    %v142 = vld [vmem:[%s1 + $0x1f8] sm:$0xf]
    %v143 = vld [vmem:[%s1 + $0x1fc] sm:$0xf]
    %v144 = vld [vmem:[%s2] sm:$0x1]
    %v146 = vperm.slane %v144, 0
    %149 = vst [vmem:[#allocation1] ss:$9 sm:$0xff] %v15
    %v150 = vld [vmem:[#allocation1] sm:$0xff]
    %v151 = vld [vmem:[#allocation1 + $0x9] sm:$0xff]
    %v152 = vld [vmem:[#allocation1 + $0x12] sm:$0xff]
    %v153 = vld [vmem:[#allocation1 + $0x1b] sm:$0xff]
    %v154 = vld [vmem:[#allocation1 + $0x24] sm:$0xff]
    %v155 = vld [vmem:[#allocation1 + $0x2d] sm:$0xff]
    %v156 = vld [vmem:[#allocation1 + $0x36] sm:$0xff]
    %v157 = vld [vmem:[#allocation1 + $0x3f] sm:$0xff]
    %v294 = vunpack.c.l.b16 %v16
    %v295 = vunpack.c.l.b16 %v17
    %v296 = vunpack.c.l.b16 %v18
    %v297 = vunpack.c.l.b16 %v19
    %v298 = vunpack.c.l.b16 %v20
    %v299 = vunpack.c.l.b16 %v21
    %v300 = vunpack.c.l.b16 %v22
    %v301 = vunpack.c.l.b16 %v23
    %v302 = vunpack.c.l.b16 %v24
    %v303 = vunpack.c.l.b16 %v25
    %v304 = vunpack.c.l.b16 %v26
    %v305 = vunpack.c.l.b16 %v27
    %v306 = vunpack.c.l.b16 %v28
    %v307 = vunpack.c.l.b16 %v29
    %v308 = vunpack.c.l.b16 %v30
    %v309 = vunpack.c.l.b16 %v31
    %v310 = vunpack.c.l.b16 %v32
    %v311 = vunpack.c.l.b16 %v33
    %v312 = vunpack.c.l.b16 %v34
    %v313 = vunpack.c.l.b16 %v35
    %v314 = vunpack.c.l.b16 %v36
    %v315 = vunpack.c.l.b16 %v37
    %v316 = vunpack.c.l.b16 %v38
    %v317 = vunpack.c.l.b16 %v39
    %v318 = vunpack.c.l.b16 %v40
    %v319 = vunpack.c.l.b16 %v41
    %v320 = vunpack.c.l.b16 %v42
    %v321 = vunpack.c.l.b16 %v43
    %v322 = vunpack.c.l.b16 %v44
    %v323 = vunpack.c.l.b16 %v45
    %v324 = vunpack.c.l.b16 %v46
    %v325 = vunpack.c.l.b16 %v47
    %v326 = vunpack.c.l.b16 %v48
    %v327 = vunpack.c.l.b16 %v49
    %v328 = vunpack.c.l.b16 %v50
    %v329 = vunpack.c.l.b16 %v51
    %v330 = vunpack.c.l.b16 %v52
    %v331 = vunpack.c.l.b16 %v53
    %v332 = vunpack.c.l.b16 %v54
    %v333 = vunpack.c.l.b16 %v55
    %v334 = vunpack.c.l.b16 %v56
    %v335 = vunpack.c.l.b16 %v57
    %v336 = vunpack.c.l.b16 %v58
    %v337 = vunpack.c.l.b16 %v59
    %v338 = vunpack.c.l.b16 %v60
    %v339 = vunpack.c.l.b16 %v61
    %v340 = vunpack.c.l.b16 %v62
    %v341 = vunpack.c.l.b16 %v63
    %v342 = vunpack.c.l.b16 %v64
    %v343 = vunpack.c.l.b16 %v65
    %v344 = vunpack.c.l.b16 %v66
    %v345 = vunpack.c.l.b16 %v67
    %v346 = vunpack.c.l.b16 %v68
    %v347 = vunpack.c.l.b16 %v69
    %v348 = vunpack.c.l.b16 %v70
    %v349 = vunpack.c.l.b16 %v71
    %v350 = vunpack.c.l.b16 %v72
    %v351 = vunpack.c.l.b16 %v73
    %v352 = vunpack.c.l.b16 %v74
    %v353 = vunpack.c.l.b16 %v75
    %v354 = vunpack.c.l.b16 %v76
    %v355 = vunpack.c.l.b16 %v77
    %v356 = vunpack.c.l.b16 %v78
    %v357 = vunpack.c.l.b16 %v79
    %v358 = vunpack.c.l.b16 %v80
    %v359 = vunpack.c.l.b16 %v81
    %v360 = vunpack.c.l.b16 %v82
    %v361 = vunpack.c.l.b16 %v83
    %v362 = vunpack.c.l.b16 %v84
    %v363 = vunpack.c.l.b16 %v85
    %v364 = vunpack.c.l.b16 %v86
    %v365 = vunpack.c.l.b16 %v87
    %v366 = vunpack.c.l.b16 %v88
    %v367 = vunpack.c.l.b16 %v89
    %v368 = vunpack.c.l.b16 %v90
    %v369 = vunpack.c.l.b16 %v91
    %v370 = vunpack.c.l.b16 %v92
    %v371 = vunpack.c.l.b16 %v93
    %v372 = vunpack.c.l.b16 %v94
    %v373 = vunpack.c.l.b16 %v95
    %v374 = vunpack.c.l.b16 %v96
    %v375 = vunpack.c.l.b16 %v97
    %v376 = vunpack.c.l.b16 %v98
    %v377 = vunpack.c.l.b16 %v99
    %v378 = vunpack.c.l.b16 %v100
    %v379 = vunpack.c.l.b16 %v101
    %v380 = vunpack.c.l.b16 %v102
    %v381 = vunpack.c.l.b16 %v103
    %v382 = vunpack.c.l.b16 %v104
    %v383 = vunpack.c.l.b16 %v105
    %v384 = vunpack.c.l.b16 %v106
    %v385 = vunpack.c.l.b16 %v107
    %v386 = vunpack.c.l.b16 %v108
    %v387 = vunpack.c.l.b16 %v109
    %v388 = vunpack.c.l.b16 %v110
    %v389 = vunpack.c.l.b16 %v111
    %v390 = vunpack.c.l.b16 %v112
    %v391 = vunpack.c.l.b16 %v113
    %v392 = vunpack.c.l.b16 %v114
    %v393 = vunpack.c.l.b16 %v115
    %v394 = vunpack.c.l.b16 %v116
    %v395 = vunpack.c.l.b16 %v117
    %v396 = vunpack.c.l.b16 %v118
    %v397 = vunpack.c.l.b16 %v119
    %v398 = vunpack.c.l.b16 %v120
    %v399 = vunpack.c.l.b16 %v121
    %v400 = vunpack.c.l.b16 %v122
    %v401 = vunpack.c.l.b16 %v123
    %v402 = vunpack.c.l.b16 %v124
    %v403 = vunpack.c.l.b16 %v125
    %v404 = vunpack.c.l.b16 %v126
    %v405 = vunpack.c.l.b16 %v127
    %v406 = vunpack.c.l.b16 %v128
    %v407 = vunpack.c.l.b16 %v129
    %v408 = vunpack.c.l.b16 %v130
    %v409 = vunpack.c.l.b16 %v131
    %v410 = vunpack.c.l.b16 %v132
    %v411 = vunpack.c.l.b16 %v133
    %v412 = vunpack.c.l.b16 %v134
    %v413 = vunpack.c.l.b16 %v135
    %v414 = vunpack.c.l.b16 %v136
    %v415 = vunpack.c.l.b16 %v137
    %v416 = vunpack.c.l.b16 %v138
    %v417 = vunpack.c.l.b16 %v139
    %v418 = vunpack.c.l.b16 %v140
    %v419 = vunpack.c.l.b16 %v141
    %v420 = vunpack.c.l.b16 %v142
    %v421 = vunpack.c.l.b16 %v143
    %v422 = vpack.c.b16 %v295, %v294
    %v423 = vpack.c.b16 %v297, %v296
    %v424 = vpack.c.b16 %v299, %v298
    %v425 = vpack.c.b16 %v301, %v300
    %v426 = vpack.c.b16 %v303, %v302
    %v427 = vpack.c.b16 %v305, %v304
    %v428 = vpack.c.b16 %v307, %v306
    %v429 = vpack.c.b16 %v309, %v308
    %v430 = vpack.c.b16 %v311, %v310
    %v431 = vpack.c.b16 %v313, %v312
    %v432 = vpack.c.b16 %v315, %v314
    %v433 = vpack.c.b16 %v317, %v316
    %v434 = vpack.c.b16 %v319, %v318
    %v435 = vpack.c.b16 %v321, %v320
    %v436 = vpack.c.b16 %v323, %v322
    %v437 = vpack.c.b16 %v325, %v324
    %v438 = vpack.c.b16 %v327, %v326
    %v439 = vpack.c.b16 %v329, %v328
    %v440 = vpack.c.b16 %v331, %v330
    %v441 = vpack.c.b16 %v333, %v332
    %v442 = vpack.c.b16 %v335, %v334
    %v443 = vpack.c.b16 %v337, %v336
    %v444 = vpack.c.b16 %v339, %v338
    %v445 = vpack.c.b16 %v341, %v340
    %v446 = vpack.c.b16 %v343, %v342
    %v447 = vpack.c.b16 %v345, %v344
    %v448 = vpack.c.b16 %v347, %v346
    %v449 = vpack.c.b16 %v349, %v348
    %v450 = vpack.c.b16 %v351, %v350
    %v451 = vpack.c.b16 %v353, %v352
    %v452 = vpack.c.b16 %v355, %v354
    %v453 = vpack.c.b16 %v357, %v356
    %v454 = vpack.c.b16 %v359, %v358
    %v455 = vpack.c.b16 %v361, %v360
    %v456 = vpack.c.b16 %v363, %v362
    %v457 = vpack.c.b16 %v365, %v364
    %v458 = vpack.c.b16 %v367, %v366
    %v459 = vpack.c.b16 %v369, %v368
    %v460 = vpack.c.b16 %v371, %v370
    %v461 = vpack.c.b16 %v373, %v372
    %v462 = vpack.c.b16 %v375, %v374
    %v463 = vpack.c.b16 %v377, %v376
    %v464 = vpack.c.b16 %v379, %v378
    %v465 = vpack.c.b16 %v381, %v380
    %v466 = vpack.c.b16 %v383, %v382
    %v467 = vpack.c.b16 %v385, %v384
    %v468 = vpack.c.b16 %v387, %v386
    %v469 = vpack.c.b16 %v389, %v388
    %v470 = vpack.c.b16 %v391, %v390
    %v471 = vpack.c.b16 %v393, %v392
    %v472 = vpack.c.b16 %v395, %v394
    %v473 = vpack.c.b16 %v397, %v396
    %v474 = vpack.c.b16 %v399, %v398
    %v475 = vpack.c.b16 %v401, %v400
    %v476 = vpack.c.b16 %v403, %v402
    %v477 = vpack.c.b16 %v405, %v404
    %v478 = vpack.c.b16 %v407, %v406
    %v479 = vpack.c.b16 %v409, %v408
    %v480 = vpack.c.b16 %v411, %v410
    %v481 = vpack.c.b16 %v413, %v412
    %v482 = vpack.c.b16 %v415, %v414
    %v483 = vpack.c.b16 %v417, %v416
    %v484 = vpack.c.b16 %v419, %v418
    %v485 = vpack.c.b16 %v421, %v420
    %550 = vmatpush.bf16.msra.mxu0 %v429
    %551 = vmatpush.bf16.msra.mxu0 %v428
    %552 = vmatpush.bf16.msra.mxu0 %v427
    %553 = vmatpush.bf16.msra.mxu0 %v426
    %554 = vmatpush.bf16.msra.mxu0 %v425
    %555 = vmatpush.bf16.msra.mxu0 %v424
    %556 = vmatpush.bf16.msra.mxu0 %v423
    %557 = vmatpush.bf16.msra.mxu0 %v422
    %558 = vmatmul.bf16.gmra.mxu0 %v150
    %v559 = vpop.f32.mrf.mxu0
    %v560 = vadd.f32 %v146, %v559
    %v561 = vpop.f32.mrf.mxu0
    %562 = vdwg.mxu0
    %563 = vmatpush.bf16.msra.mxu0 %v437
    %564 = vmatpush.bf16.msra.mxu0 %v436
    %565 = vmatpush.bf16.msra.mxu0 %v435
    %566 = vmatpush.bf16.msra.mxu0 %v434
    %567 = vmatpush.bf16.msra.mxu0 %v433
    %568 = vmatpush.bf16.msra.mxu0 %v432
    %569 = vmatpush.bf16.msra.mxu0 %v431
    %570 = vmatpush.bf16.msra.mxu0 %v430
    %571 = vmatmul.bf16.gmra.mxu0 %v151
    %v572 = vpop.f32.mrf.mxu0
    %v573 = vadd.f32 %v560, %v572
    %v574 = vpop.f32.mrf.mxu0
    %575 = vdwg.mxu0
    %576 = vmatpush.bf16.msra.mxu0 %v445
    %577 = vmatpush.bf16.msra.mxu0 %v444
    %578 = vmatpush.bf16.msra.mxu0 %v443
    %579 = vmatpush.bf16.msra.mxu0 %v442
    %580 = vmatpush.bf16.msra.mxu0 %v441
    %581 = vmatpush.bf16.msra.mxu0 %v440
    %582 = vmatpush.bf16.msra.mxu0 %v439
    %583 = vmatpush.bf16.msra.mxu0 %v438
    %584 = vmatmul.bf16.gmra.mxu0 %v152
    %v585 = vpop.f32.mrf.mxu0
    %v586 = vadd.f32 %v573, %v585
    %v587 = vpop.f32.mrf.mxu0
    %588 = vdwg.mxu0
    %589 = vmatpush.bf16.msra.mxu0 %v453
    %590 = vmatpush.bf16.msra.mxu0 %v452
    %591 = vmatpush.bf16.msra.mxu0 %v451
    %592 = vmatpush.bf16.msra.mxu0 %v450
    %593 = vmatpush.bf16.msra.mxu0 %v449
    %594 = vmatpush.bf16.msra.mxu0 %v448
    %595 = vmatpush.bf16.msra.mxu0 %v447
    %596 = vmatpush.bf16.msra.mxu0 %v446
    %597 = vmatmul.bf16.gmra.mxu0 %v153
    %v598 = vpop.f32.mrf.mxu0
    %v599 = vadd.f32 %v586, %v598
    %v600 = vpop.f32.mrf.mxu0
    %601 = vdwg.mxu0
    %602 = vmatpush.bf16.msra.mxu0 %v461
    %603 = vmatpush.bf16.msra.mxu0 %v460
    %604 = vmatpush.bf16.msra.mxu0 %v459
    %605 = vmatpush.bf16.msra.mxu0 %v458
    %606 = vmatpush.bf16.msra.mxu0 %v457
    %607 = vmatpush.bf16.msra.mxu0 %v456
    %608 = vmatpush.bf16.msra.mxu0 %v455
    %609 = vmatpush.bf16.msra.mxu0 %v454
    %610 = vmatmul.bf16.gmra.mxu0 %v154
    %v611 = vpop.f32.mrf.mxu0
    %v612 = vadd.f32 %v599, %v611
    %v613 = vpop.f32.mrf.mxu0
    %614 = vdwg.mxu0
    %615 = vmatpush.bf16.msra.mxu0 %v469
    %616 = vmatpush.bf16.msra.mxu0 %v468
    %617 = vmatpush.bf16.msra.mxu0 %v467
    %618 = vmatpush.bf16.msra.mxu0 %v466
    %619 = vmatpush.bf16.msra.mxu0 %v465
    %620 = vmatpush.bf16.msra.mxu0 %v464
    %621 = vmatpush.bf16.msra.mxu0 %v463
    %622 = vmatpush.bf16.msra.mxu0 %v462
    %623 = vmatmul.bf16.gmra.mxu0 %v155
    %v624 = vpop.f32.mrf.mxu0
    %v625 = vadd.f32 %v612, %v624
    %v626 = vpop.f32.mrf.mxu0
    %627 = vdwg.mxu0
    %628 = vmatpush.bf16.msra.mxu0 %v477
    %629 = vmatpush.bf16.msra.mxu0 %v476
    %630 = vmatpush.bf16.msra.mxu0 %v475
    %631 = vmatpush.bf16.msra.mxu0 %v474
    %632 = vmatpush.bf16.msra.mxu0 %v473
    %633 = vmatpush.bf16.msra.mxu0 %v472
    %634 = vmatpush.bf16.msra.mxu0 %v471
    %635 = vmatpush.bf16.msra.mxu0 %v470
    %636 = vmatmul.bf16.gmra.mxu0 %v156
    %v637 = vpop.f32.mrf.mxu0
    %v638 = vadd.f32 %v625, %v637
    %v639 = vpop.f32.mrf.mxu0
    %640 = vdwg.mxu0
    %641 = vmatpush.bf16.msra.mxu0 %v485
    %642 = vmatpush.bf16.msra.mxu0 %v484
    %643 = vmatpush.bf16.msra.mxu0 %v483
    %644 = vmatpush.bf16.msra.mxu0 %v482
    %645 = vmatpush.bf16.msra.mxu0 %v481
    %646 = vmatpush.bf16.msra.mxu0 %v480
    %647 = vmatpush.bf16.msra.mxu0 %v479
    %648 = vmatpush.bf16.msra.mxu0 %v478
    %649 = vmatmul.bf16.gmra.mxu0 %v157
    %v650 = vpop.f32.mrf.mxu0
    %v651 = vadd.f32 %v638, %v650
    %v652 = vpop.f32.mrf.mxu0
    %653 = vdwg.mxu0
    %v654 = vmax.f32 %v651, 0.0
    %vm655 = vcmask 254976
    %656 = vst.msk [vmem:[#allocation2] sm:$0x3] %vm655, %v654
    // Predicated region
    $region14: #{_encoder_forward_impl.1} parent=1 // pred_check
      _
    $region15: #{_encoder_forward_impl.1} parent=1 // pred_check_branch
      %658 = sbr.rel (0) target = $region17
    $region16: #{_encoder_forward_impl.1} parent=1 // pred_region
      %660 = vsyncadd [#allocation3], 0
      %s662 = sshll.u32 [#allocation2], 4
      %s663 = int_to_ptr.vmem [resolvable:$true] %s662
      %s664 = sshll.u32 %s3, 4
      %s665 = int_to_ptr.hbm [resolvable:$true] %s664
      %667 = dma.vmem_to_hbm [thread:$0]  %s663, 32, %s665, [#allocation3]
    $region17: #{_encoder_forward_impl.1} parent=1 // pred_fallthru
      _
    // Predicated region
    $region18: #{_encoder_forward_impl.1} parent=1 // pred_check
      _
    $region19: #{_encoder_forward_impl.1} parent=1 // pred_check_branch
      %669 = sbr.rel (0) target = $region21
    $region20: #{_encoder_forward_impl.1} parent=1 // pred_region
      %671 = dma.done [#allocation3], 32
    $region21: #{_encoder_forward_impl.1} parent=1 // pred_fallthru
      _
    %672 = vsyncpa [#allocation3], 1

</llo_original>
